<compile_context>
chip_gen: v6e
topology: v6e:2x2x1
jax: 0.10.0
libtpu: 0.0.40
codegen_flags: <defaults>
</compile_context>

<pallas_src>
import functools

import jax
import jax.numpy as jnp
from jax.experimental import pallas as pl
from jax.experimental.pallas import tpu as pltpu


def _round_up(x, m):
    return ((x + m - 1) // m) * m


def _decomp_kernel(x_ref, fwd_ref, inv_ref, s_ref, r_ref, *, fp, top_k):
    """One (batch, channel-tile) grid step.

    x_ref:   (L, TC)     input tile, time on sublanes, channels on lanes
    fwd_ref: (2*Fp, L)   stacked [Re; Im] forward rfft matrix (zero-padded rows)
    inv_ref: (L, 2*Fp)   stacked [CrT | CiT] inverse rfft matrix (zero-padded cols)
    s_ref:   (L, TC)     x_filtered (top-k frequency part)
    r_ref:   (L, TC)     residual x - x_filtered
    """
    x = x_ref[...]                                                     # (L, TC)

    # Forward real DFT (Re and Im stacked): ONE MXU matmul, f32 accumulation.
    xs = jnp.dot(fwd_ref[...], x, preferred_element_type=jnp.float32)  # (2Fp, TC)
    xr = xs[:fp, :]
    xi = xs[fp:, :]

    # Squared magnitude per rfft bin (padded bins are exactly zero).
    mag2 = xr * xr + xi * xi                                           # (Fp, TC)

    # Per-column k-th largest magnitude: k-1 rounds of "remove current max"
    # (top_k is a small static int -> fully unrolled; cross-sublane maxes hit
    # the XLU, selects the VPU).
    # TODO(synk): for large top_k, restructure as partial-max + refinement to
    # avoid O(k * Fp * TC) full passes.
    m = mag2
    for _ in range(top_k - 1):
        cur = jnp.max(m, axis=0, keepdims=True)                        # (1, TC)
        m = jnp.where(m >= cur, jnp.float32(-1.0), m)                  # mag2 >= 0
    kth = jnp.max(m, axis=0, keepdims=True)                            # (1, TC)

    # Keep bins with |Xf|^2 >= k-th largest; single select on the stacked
    # spectrum (no mask->f32 cast, no extra multiplies).
    keep = mag2 >= kth                                                 # (Fp, TC)
    xs_m = jnp.where(jnp.concatenate([keep, keep], axis=0), xs,
                     jnp.float32(0.0))                                 # (2Fp, TC)

    # Masked inverse real DFT: ONE MXU matmul.
    s = jnp.dot(inv_ref[...], xs_m, preferred_element_type=jnp.float32)  # (L, TC)

    s_ref[...] = s.astype(s_ref.dtype)
    r_ref[...] = (x - s).astype(r_ref.dtype)


def _pick_d_tile(d, max_tile=512):
    """Channel-tile width: multiple of 128, as wide as possible (<= max_tile)."""
    if d % 128 == 0:
        best, t = 128, 128
        while t <= max_tile:
            if d % t == 0:
                best = t
            t += 128
        return best, d
    d_pad = _round_up(d, 128)
    tile = min(max_tile, d_pad)
    return tile, _round_up(d_pad, tile)


def series_decomp_fft(x, *, fft_len, top_k, max_col_tile=512):
    """x: (B, L, D) -> (S, R), each (B, L, D) float32 (matches the module)."""
    B, L, D = x.shape
    F = fft_len // 2 + 1
    assert 1 <= top_k <= F, "top_k must be <= number of rfft bins"
    Fp = _round_up(F, 8)          # sublane-aligned bin count (extra bins are zero)

    # ---- exact DFT / IDFT real-linear maps, stacked for fused matmuls ----
    m_fwd = jnp.fft.rfft(jnp.eye(L, dtype=jnp.float32), n=fft_len, axis=0)   # (F, L)
    eye_f = jnp.eye(F, dtype=jnp.complex64)
    crt = jnp.fft.irfft(eye_f, n=L, axis=1).T.astype(jnp.float32)            # (L, F)
    cit = jnp.fft.irfft(1j * eye_f, n=L, axis=1).T.astype(jnp.float32)       # (L, F)
    fwd = jnp.zeros((2 * Fp, L), jnp.float32)
    fwd = fwd.at[:F].set(jnp.real(m_fwd).astype(jnp.float32))
    fwd = fwd.at[Fp:Fp + F].set(jnp.imag(m_fwd).astype(jnp.float32))
    inv = jnp.zeros((L, 2 * Fp), jnp.float32)
    inv = inv.at[:, :F].set(crt).at[:, Fp:Fp + F].set(cit)
    # TODO(synk): for MXU-bound (very long L) configs, cast fwd/inv and x to
    # bf16 at the matmul inputs after re-validating the tolerance.

    # ---- lane-dense channel tiling directly on (B, L, D): no transposes ----
    d_tile, d_pad = _pick_d_tile(D, max_col_tile)
    x_in = x.astype(jnp.float32)
    if d_pad != D:
        x_in = jnp.pad(x_in, ((0, 0), (0, 0), (0, d_pad - D)))

    # VMEM budget: double-buffered x/S/R tiles + resident stacked DFT matrices.
    tile_bytes = L * d_tile * 4
    const_bytes = 2 * (2 * Fp * L * 4)
    needed = 3 * 2 * tile_bytes + 2 * const_bytes
    vmem_limit = int(min(96 * 2**20, max(32 * 2**20, 2 * needed)))
    # TODO(synk): for very long L on v7x (64 MiB VMEM), add a K-blocked
    # "arbitrary" grid axis with an f32 accumulator instead of keeping the
    # full (2Fp, L)/(L, 2Fp) matrices resident.

    kernel = functools.partial(_decomp_kernel, fp=Fp, top_k=top_k)
    s, r = pl.pallas_call(
        kernel,
        out_shape=(jax.ShapeDtypeStruct((B, L, d_pad), jnp.float32),
                   jax.ShapeDtypeStruct((B, L, d_pad), jnp.float32)),
        grid=(B, d_pad // d_tile),
        in_specs=[
            pl.BlockSpec((None, L, d_tile), lambda b, j: (b, 0, j)),  # x tile
            pl.BlockSpec((2 * Fp, L), lambda b, j: (0, 0)),           # fwd (resident)
            pl.BlockSpec((L, 2 * Fp), lambda b, j: (0, 0)),           # inv (resident)
        ],
        out_specs=(pl.BlockSpec((None, L, d_tile), lambda b, j: (b, 0, j)),
                   pl.BlockSpec((None, L, d_tile), lambda b, j: (b, 0, j))),
        compiler_params=pltpu.CompilerParams(
            dimension_semantics=("parallel", "parallel"),
            vmem_limit_bytes=vmem_limit),
    )(x_in, fwd, inv)

    if d_pad != D:
        s = s[:, :, :D]
        r = r[:, :, :D]
    return s, r


def reference(x, *, fft_len, top_k):
    """Pure-JAX reference mirroring the PyTorch forward."""
    B, L, D = x.shape
    xf = jnp.fft.rfft(x, n=fft_len, axis=1)                       # (B, F, D)
    F = xf.shape[1]
    mag = jnp.abs(xf)
    _, idx = jax.lax.top_k(jnp.moveaxis(mag, 1, -1), top_k)       # (B, D, k)
    mask = jax.nn.one_hot(idx, F, dtype=jnp.float32).sum(axis=-2)  # (B, D, F)
    mask = jnp.moveaxis(mask, -1, 1)                              # (B, F, D)
    x_filt = jnp.fft.irfft(xf * mask, n=L, axis=1).astype(jnp.float32)
    return x_filt, (x - x_filt).astype(jnp.float32)


if __name__ == "__main__":
    # Small deterministic example: batch=2, seq_len=96, channels=16.
    B, L, D = 2, 96, 16
    fft_len, top_k = 96, 5

    key = jax.random.PRNGKey(0)
    x = jax.random.normal(key, (B, L, D), dtype=jnp.float32)

    s, r = series_decomp_fft(x, fft_len=fft_len, top_k=top_k)
    s, r = jax.block_until_ready((s, r))
    assert s.shape == (B, L, D) and r.shape == (B, L, D)

    s_ref, r_ref = reference(x, fft_len=fft_len, top_k=top_k)
    err_s = float(jnp.max(jnp.abs(s - s_ref)))
    err_r = float(jnp.max(jnp.abs(r - r_ref)))
    assert err_s < 1e-3, f"S max abs error {err_s}"
    assert err_r < 1e-3, f"R max abs error {err_r}"
    print("KERNEL_OK")
</pallas_src>

<mosaic_0001>
module attributes {stable_mosaic.version = 11 : i64} {
  func.func @_decomp_kernel(%arg0: i32, %arg1: i32, %arg2: memref<1x96x128xf32, #tpu.memory_space<vmem>>, %arg3: memref<112x96xf32, #tpu.memory_space<vmem>>, %arg4: memref<96x112xf32, #tpu.memory_space<vmem>>, %arg5: memref<1x96x128xf32, #tpu.memory_space<vmem>>, %arg6: memref<1x96x128xf32, #tpu.memory_space<vmem>>) attributes {dimension_semantics = [#tpu.dimension_semantics<parallel>, #tpu.dimension_semantics<parallel>], iteration_bounds = array<i64: 2, 1>, scalar_prefetch = 0 : i64, scratch_operands = 0 : i64, tpu.core_type = #tpu.core_type<tc>, window_params = [{transform_indices = @transform_0, window_bounds = array<i64: 1, 96, 128>}, {pipeline_mode = #tpu.pipeline_mode<synchronous>, transform_indices = @transform_1, window_bounds = array<i64: 112, 96>}, {pipeline_mode = #tpu.pipeline_mode<synchronous>, transform_indices = @transform_2, window_bounds = array<i64: 96, 112>}, {transform_indices = @transform_3, window_bounds = array<i64: 1, 96, 128>}, {transform_indices = @transform_4, window_bounds = array<i64: 1, 96, 128>}]} {
    %c0 = arith.constant 0 : index
    %c0_0 = arith.constant 0 : index
    %c0_1 = arith.constant 0 : index
    %0 = vector.load %arg2[%c0, %c0_0, %c0_1] : memref<1x96x128xf32, #tpu.memory_space<vmem>>, vector<1x96x128xf32>
    %1 = vector.shape_cast %0 : vector<1x96x128xf32> to vector<96x128xf32>
    %c0_2 = arith.constant 0 : index
    %c0_3 = arith.constant 0 : index
    %2 = vector.load %arg3[%c0_2, %c0_3] : memref<112x96xf32, #tpu.memory_space<vmem>>, vector<112x96xf32>
    %cst = arith.constant dense<0.000000e+00> : vector<112x128xf32>
    %3 = tpu.matmul %2, %1, %cst {dimension_numbers = #tpu.dot_dimension_numbers<[1], [0], [0], [1], [0, 0, 1, 1], [], []>} : vector<112x96xf32>, vector<96x128xf32>, vector<112x128xf32> -> vector<112x128xf32>
    %4 = vector.extract_strided_slice %3 {offsets = [0, 0], sizes = [56, 128], strides = [1, 1]} : vector<112x128xf32> to vector<56x128xf32>
    %5 = vector.extract_strided_slice %3 {offsets = [56, 0], sizes = [56, 128], strides = [1, 1]} : vector<112x128xf32> to vector<56x128xf32>
    %6 = arith.mulf %4, %4 : vector<56x128xf32>
    %7 = arith.mulf %5, %5 : vector<56x128xf32>
    %8 = arith.addf %6, %7 : vector<56x128xf32>
    %cst_4 = arith.constant dense<0xFF800000> : vector<128xf32>
    %9 = vector.multi_reduction <maximumf>, %8, %cst_4 [0] : vector<56x128xf32> to vector<128xf32>
    %10 = vector.shape_cast %9 : vector<128xf32> to vector<1x128xf32>
    %11 = vector.broadcast %10 : vector<1x128xf32> to vector<56x128xf32>
    %12 = arith.cmpf oge, %8, %11 : vector<56x128xf32>
    %cst_5 = arith.constant -1.000000e+00 : f32
    %13 = vector.broadcast %cst_5 : f32 to vector<56x128xf32>
    %14 = arith.select %12, %13, %8 : vector<56x128xi1>, vector<56x128xf32>
    %cst_6 = arith.constant dense<0xFF800000> : vector<128xf32>
    %15 = vector.multi_reduction <maximumf>, %14, %cst_6 [0] : vector<56x128xf32> to vector<128xf32>
    %16 = vector.shape_cast %15 : vector<128xf32> to vector<1x128xf32>
    %17 = vector.broadcast %16 : vector<1x128xf32> to vector<56x128xf32>
    %18 = arith.cmpf oge, %14, %17 : vector<56x128xf32>
    %cst_7 = arith.constant -1.000000e+00 : f32
    %19 = vector.broadcast %cst_7 : f32 to vector<56x128xf32>
    %20 = arith.select %18, %19, %14 : vector<56x128xi1>, vector<56x128xf32>
    %cst_8 = arith.constant dense<0xFF800000> : vector<128xf32>
    %21 = vector.multi_reduction <maximumf>, %20, %cst_8 [0] : vector<56x128xf32> to vector<128xf32>
    %22 = vector.shape_cast %21 : vector<128xf32> to vector<1x128xf32>
    %23 = vector.broadcast %22 : vector<1x128xf32> to vector<56x128xf32>
    %24 = arith.cmpf oge, %20, %23 : vector<56x128xf32>
    %cst_9 = arith.constant -1.000000e+00 : f32
    %25 = vector.broadcast %cst_9 : f32 to vector<56x128xf32>
    %26 = arith.select %24, %25, %20 : vector<56x128xi1>, vector<56x128xf32>
    %cst_10 = arith.constant dense<0xFF800000> : vector<128xf32>
    %27 = vector.multi_reduction <maximumf>, %26, %cst_10 [0] : vector<56x128xf32> to vector<128xf32>
    %28 = vector.shape_cast %27 : vector<128xf32> to vector<1x128xf32>
    %29 = vector.broadcast %28 : vector<1x128xf32> to vector<56x128xf32>
    %30 = arith.cmpf oge, %26, %29 : vector<56x128xf32>
    %cst_11 = arith.constant -1.000000e+00 : f32
    %31 = vector.broadcast %cst_11 : f32 to vector<56x128xf32>
    %32 = arith.select %30, %31, %26 : vector<56x128xi1>, vector<56x128xf32>
    %cst_12 = arith.constant dense<0xFF800000> : vector<128xf32>
    %33 = vector.multi_reduction <maximumf>, %32, %cst_12 [0] : vector<56x128xf32> to vector<128xf32>
    %34 = vector.shape_cast %33 : vector<128xf32> to vector<1x128xf32>
    %35 = vector.broadcast %34 : vector<1x128xf32> to vector<56x128xf32>
    %36 = arith.cmpf oge, %8, %35 : vector<56x128xf32>
    %37 = tpu.concatenate %36, %36 in 0 : vector<56x128xi1>, vector<56x128xi1> -> vector<112x128xi1>
    %cst_13 = arith.constant 0.000000e+00 : f32
    %38 = vector.broadcast %cst_13 : f32 to vector<112x128xf32>
    %39 = arith.select %37, %3, %38 : vector<112x128xi1>, vector<112x128xf32>
    %c0_14 = arith.constant 0 : index
    %c0_15 = arith.constant 0 : index
    %40 = vector.load %arg4[%c0_14, %c0_15] : memref<96x112xf32, #tpu.memory_space<vmem>>, vector<96x112xf32>
    %cst_16 = arith.constant dense<0.000000e+00> : vector<96x128xf32>
    %41 = tpu.matmul %40, %39, %cst_16 {dimension_numbers = #tpu.dot_dimension_numbers<[1], [0], [0], [1], [0, 0, 1, 1], [], []>} : vector<96x112xf32>, vector<112x128xf32>, vector<96x128xf32> -> vector<96x128xf32>
    %c0_17 = arith.constant 0 : index
    %c0_18 = arith.constant 0 : index
    %c0_19 = arith.constant 0 : index
    %42 = vector.load %arg5[%c0_17, %c0_18, %c0_19] : memref<1x96x128xf32, #tpu.memory_space<vmem>>, vector<1x96x128xf32>
    %43 = vector.shape_cast %42 : vector<1x96x128xf32> to vector<96x128xf32>
    %44 = vector.shape_cast %41 : vector<96x128xf32> to vector<1x96x128xf32>
    tpu.vector_store %arg5[%c0_17, %c0_18, %c0_19], %44 {strides = array<i32>} : memref<1x96x128xf32, #tpu.memory_space<vmem>>, vector<1x96x128xf32>,
    %45 = arith.subf %1, %41 : vector<96x128xf32>
    %c0_20 = arith.constant 0 : index
    %c0_21 = arith.constant 0 : index
    %c0_22 = arith.constant 0 : index
    %46 = vector.load %arg6[%c0_20, %c0_21, %c0_22] : memref<1x96x128xf32, #tpu.memory_space<vmem>>, vector<1x96x128xf32>
    %47 = vector.shape_cast %46 : vector<1x96x128xf32> to vector<96x128xf32>
    %48 = vector.shape_cast %45 : vector<96x128xf32> to vector<1x96x128xf32>
    tpu.vector_store %arg6[%c0_20, %c0_21, %c0_22], %48 {strides = array<i32>} : memref<1x96x128xf32, #tpu.memory_space<vmem>>, vector<1x96x128xf32>,
    return
  }
  func.func @transform_0(%arg0: i32, %arg1: i32) -> (i32, i32, i32) {
    %c0_i32 = arith.constant 0 : i32
    %c0_i32_0 = arith.constant 0 : i32
    return %arg0, %c0_i32, %arg1 : i32, i32, i32
  }
  func.func @transform_1(%arg0: i32, %arg1: i32) -> (i32, i32) {
    %c0_i32 = arith.constant 0 : i32
    %c0_i32_0 = arith.constant 0 : i32
    %c0_i32_1 = arith.constant 0 : i32
    return %c0_i32, %c0_i32_0 : i32, i32
  }
  func.func @transform_2(%arg0: i32, %arg1: i32) -> (i32, i32) {
    %c0_i32 = arith.constant 0 : i32
    %c0_i32_0 = arith.constant 0 : i32
    %c0_i32_1 = arith.constant 0 : i32
    return %c0_i32, %c0_i32_0 : i32, i32
  }
  func.func @transform_3(%arg0: i32, %arg1: i32) -> (i32, i32, i32) {
    %c0_i32 = arith.constant 0 : i32
    %c0_i32_0 = arith.constant 0 : i32
    return %arg0, %c0_i32, %arg1 : i32, i32, i32
  }
  func.func @transform_4(%arg0: i32, %arg1: i32) -> (i32, i32, i32) {
    %c0_i32 = arith.constant 0 : i32
    %c0_i32_0 = arith.constant 0 : i32
    return %arg0, %c0_i32, %arg1 : i32, i32, i32
  }
}

</mosaic_0001>

<llo_original>
// kernel: tpu_custom_call.1
$region0: #{tpu_custom_call.1}
  #allocation0 [shape = 'u32[]', space=smem, size = 0x4, offset = 0x4, fixed_abs, tag = 'smem constant byte address 0x4 - core index']
  #allocation1 [shape = 'u32[144,128]{1,0:T(1,128)}', space=vmem, size = 0x12000, scoped, tag = 'internal scratch']
  %s0 = inlined_call_operand.vmem [shape: f32[2,96,128], index: 0, kind: input, shape index: {}]
  %s1 = inlined_call_operand.vmem [shape: f32[112,96], index: 1, kind: input, shape index: {}]
  %s2 = inlined_call_operand.hbm [shape: f32[96,112], index: 2, kind: input, shape index: {}]
  %s3 = inlined_call_operand.hbm [shape: f32[2,96,128], index: 3, kind: output, shape index: {0}]
  %s4 = inlined_call_operand.hbm [shape: f32[2,96,128], index: 4, kind: output, shape index: {1}]
  %5 = xla_tuple %s3, %s4
  %s6 = sld [smem:[#allocation0]]
  $region57: #{tpu_custom_call.1} parent=0
    _
  %s8 = ssub.s32 1, %s6
  %s9 = scalar_select 0, %s8, %s6
  $region1: #{tpu_custom_call.1} parent=0
    #allocation2 [shape = 'u8[49152]{0}', space=vmem, size = 0xc000, scoped, tag = 'input window, operand 2, single buffered']
    #allocation3 [shape = 's32[2]{0}', space=sflag, size = 0x8, scoped, tag = 'scoped memory for tpu_custom_call.1']
    #allocation4 [shape = 's32[2]{0}', space=sflag, size = 0x8, scoped, tag = 'scoped memory for tpu_custom_call.1']
    #allocation5 [shape = 'u8[98304]{0}', space=vmem, size = 0x18000, scoped, tag = 'output window, operand 0']
    #allocation6 [shape = 'u8[98304]{0}', space=vmem, size = 0x18000, scoped, tag = 'output window, operand 1']
    #allocation7 [shape = 's32[2]{0}', space=sflag, size = 0x8, scoped, tag = 'scoped memory for tpu_custom_call.1']
    %10 = vsyncpa [#allocation3], 0
    %11 = vsyncpa [#allocation4], 0
    %s12 = scalar_lea.sflag [#allocation4], 1
    %13 = vsyncpa %s12, 0
    %14 = vsyncpa [#allocation7], 0
    %s15 = scalar_lea.sflag [#allocation7], 1
    %16 = vsyncpa %s15, 0
    loop: start=0, step=1, limit=4
    $region2: #{tpu_custom_call.1} parent=1 // loop_pre_header
      _
    $region3: #{tpu_custom_call.1} parent=1 // loop_header
      %s18 = sphi 0, %s22
      %p19 = scmp.ge.s32.totalorder %s18, 4
      %s25 = sphi 0, %s37
      %s26 = sphi 0, %s33
      %s27 = sphi 0, %s25
      %s28 = sphi 0, %s26
      %s29 = sphi 0, %s27
      %s30 = sphi 0, %s28
      %s42 = sphi 0, %s44
      %s45 = sphi 0, %s42
      %s46 = sphi 0, %s45
      %s62 = sphi 0, %s46
      %s66 = sphi 0, %s66
      %s68 = sphi 0, %s66
      %s69 = sphi 0, %s68
      %s83 = sphi 0, %s69
      %s87 = sphi 0, %s87
      %s89 = sphi 0, %s87
      %s90 = sphi 0, %s89
      %s104 = sphi 0, %s90
      %s112 = sphi 0, %s114
      %s115 = sphi 0, %s112
      %s116 = sphi 0, %s115
      %s132 = sphi 0, %s116
      %s140 = sphi 0, %s142
      %s143 = sphi 0, %s140
      %s144 = sphi 0, %s143
      %s160 = sphi 0, %s144
    $region4: #{tpu_custom_call.1} parent=1 // loop_header_branch
      %21 = sbr.rel (%p19) target = $region8
    $region5: #{tpu_custom_call.1} parent=1 // loop_body
      %s23 = ssub.s32 %s18, 1
      %s24 = ssub.s32 %s18, 2
      %s31 = sadd.s32 1, %s26
      %p32 = scmp.ge.s32.totalorder %s31, 1
      %s33 = scalar_select %p32, 0, %s31
      %s34 = sadd.s32 1, %s25
      %s35 = scalar_select %p32, %s34, %s25
      %p36 = scmp.ge.s32.totalorder %s35, 2
      %s37 = scalar_select %p36, 0, %s35
      %s38 = ssub.s32 %s25, %s37
      %s39 = ssub.s32 %s26, %s33
      %s40 = sor.u32 %s38, %s39
      %p41 = scmp.eq.s32.totalorder %s40, 0
      %s43 = sadd.s32 %s42, 1
      %s44 = scalar_select %p41, %s42, %s43
      %p47 = pneg %p41
      %p48 = scmp.eq.s32.totalorder %s18, 1
      %p49 = por %p47, %p48
      %p50 = scmp.ne.s32.totalorder %s42, %s45
      %p51 = scmp.eq.s32.totalorder %s18, 0
      %p52 = por %p50, %p51
      %p53 = scmp.ne.s32.totalorder %s42, %s45
      %p54 = scmp.eq.s32.totalorder %s23, 1
      %p55 = por %p53, %p54
      %p56 = scmp.ne.s32.totalorder %s45, %s46
      %p57 = scmp.eq.s32.totalorder %s23, 0
      %p58 = por %p56, %p57
      %p59 = scmp.ne.s32.totalorder %s45, %s46
      %p60 = scmp.eq.s32.totalorder %s24, 1
      %p61 = por %p59, %p60
      %p63 = scmp.ne.s32.totalorder %s46, %s62
      %p64 = scmp.eq.s32.totalorder %s24, 0
      %p65 = por %p63, %p64
      %s67 = sadd.s32 %s66, 1
      %p70 = scmp.eq.s32.totalorder %s18, 1
      %p71 = scmp.ne.s32.totalorder %s66, %s68
      %p72 = scmp.eq.s32.totalorder %s18, 0
      %p73 = por %p71, %p72
      %p74 = scmp.ne.s32.totalorder %s66, %s68
      %p75 = scmp.eq.s32.totalorder %s23, 1
      %p76 = por %p74, %p75
      %p77 = scmp.ne.s32.totalorder %s68, %s69
      %p78 = scmp.eq.s32.totalorder %s23, 0
      %p79 = por %p77, %p78
      %p80 = scmp.ne.s32.totalorder %s68, %s69
      %p81 = scmp.eq.s32.totalorder %s24, 1
      %p82 = por %p80, %p81
      %p84 = scmp.ne.s32.totalorder %s69, %s83
      %p85 = scmp.eq.s32.totalorder %s24, 0
      %p86 = por %p84, %p85
      %s88 = sadd.s32 %s87, 1
      %p91 = scmp.eq.s32.totalorder %s18, 1
      %p92 = scmp.ne.s32.totalorder %s87, %s89
      %p93 = scmp.eq.s32.totalorder %s18, 0
      %p94 = por %p92, %p93
      %p95 = scmp.ne.s32.totalorder %s87, %s89
      %p96 = scmp.eq.s32.totalorder %s23, 1
      %p97 = por %p95, %p96
      %p98 = scmp.ne.s32.totalorder %s89, %s90
      %p99 = scmp.eq.s32.totalorder %s23, 0
      %p100 = por %p98, %p99
      %p101 = scmp.ne.s32.totalorder %s89, %s90
      %p102 = scmp.eq.s32.totalorder %s24, 1
      %p103 = por %p101, %p102
      %p105 = scmp.ne.s32.totalorder %s90, %s104
      %p106 = scmp.eq.s32.totalorder %s24, 0
      %p107 = por %p105, %p106
      %s108 = ssub.s32 %s25, %s37
      %s109 = ssub.s32 %s26, %s33
      %s110 = sor.u32 %s108, %s109
      %p111 = scmp.eq.s32.totalorder %s110, 0
      %s113 = sadd.s32 %s112, 1
      %s114 = scalar_select %p111, %s112, %s113
      %p117 = pneg %p111
      %p118 = scmp.eq.s32.totalorder %s18, 1
      %p119 = por %p117, %p118
      %p120 = scmp.ne.s32.totalorder %s112, %s115
      %p121 = scmp.eq.s32.totalorder %s18, 0
      %p122 = por %p120, %p121
      %p123 = scmp.ne.s32.totalorder %s112, %s115
      %p124 = scmp.eq.s32.totalorder %s23, 1
      %p125 = por %p123, %p124
      %p126 = scmp.ne.s32.totalorder %s115, %s116
      %p127 = scmp.eq.s32.totalorder %s23, 0
      %p128 = por %p126, %p127
      %p129 = scmp.ne.s32.totalorder %s115, %s116
      %p130 = scmp.eq.s32.totalorder %s24, 1
      %p131 = por %p129, %p130
      %p133 = scmp.ne.s32.totalorder %s116, %s132
      %p134 = scmp.eq.s32.totalorder %s24, 0
      %p135 = por %p133, %p134
      %s136 = ssub.s32 %s25, %s37
      %s137 = ssub.s32 %s26, %s33
      %s138 = sor.u32 %s136, %s137
      %p139 = scmp.eq.s32.totalorder %s138, 0
      %s141 = sadd.s32 %s140, 1
      %s142 = scalar_select %p139, %s140, %s141
      %p145 = pneg %p139
      %p146 = scmp.eq.s32.totalorder %s18, 1
      %p147 = por %p145, %p146
      %p148 = scmp.ne.s32.totalorder %s140, %s143
      %p149 = scmp.eq.s32.totalorder %s18, 0
      %p150 = por %p148, %p149
      %p151 = scmp.ne.s32.totalorder %s140, %s143
      %p152 = scmp.eq.s32.totalorder %s23, 1
      %p153 = por %p151, %p152
      %p154 = scmp.ne.s32.totalorder %s143, %s144
      %p155 = scmp.eq.s32.totalorder %s23, 0
      %p156 = por %p154, %p155
      %p157 = scmp.ne.s32.totalorder %s143, %s144
      %p158 = scmp.eq.s32.totalorder %s24, 1
      %p159 = por %p157, %p158
      %p161 = scmp.ne.s32.totalorder %s144, %s160
      %p162 = scmp.eq.s32.totalorder %s24, 0
      %p163 = por %p161, %p162
      %p164 = scmp.le.s32.totalorder 1, %s18
      %p165 = scmp.lt.s32.totalorder %s18, 3
      %p166 = pnand %p164, %p165
      %p167 = pneg %p166
      // Predicated region
      $region9: #{tpu_custom_call.1} parent=5 // pred_check
        _
      $region10: #{tpu_custom_call.1} parent=5 // pred_check_branch
        %169 = sbr.rel (%p166) target = $region12
      $region11: #{tpu_custom_call.1} parent=5 // pred_region
        %s170 = ssub.s32 %s18, 1
        // Predicated region
        $region13: #{tpu_custom_call.1} parent=11 // pred_check
          %p171 = pneg %p79
        $region14: #{tpu_custom_call.1} parent=11 // pred_check_branch
          %173 = sbr.rel (%p171) target = $region16
        $region15: #{tpu_custom_call.1} parent=11 // pred_region
          _
        $region16: #{tpu_custom_call.1} parent=11 // pred_fallthru
          _
        // Predicated region
        $region17: #{tpu_custom_call.1} parent=11 // pred_check
          %p174 = pneg %p100
        $region18: #{tpu_custom_call.1} parent=11 // pred_check_branch
          %176 = sbr.rel (%p174) target = $region20
        $region19: #{tpu_custom_call.1} parent=11 // pred_region
          %s178 = ssub.s32 1536, 1536
          %179 = vsyncadd [#allocation3], %s178
          %s180 = sshll.u32 [#allocation2], 4
          %s181 = int_to_ptr.vmem [resolvable:$true] %s180
          %186 = dma.hbm_to_vmem [thread:$0]  %s2, 1536, %s181, [#allocation3], 128, 128, 8
        $region20: #{tpu_custom_call.1} parent=11 // pred_fallthru
          _
      $region12: #{tpu_custom_call.1} parent=5 // pred_fallthru
        _
      %p187 = scmp.lt.s32.totalorder %s18, 2
      // Predicated region
      $region21: #{tpu_custom_call.1} parent=5 // pred_check
        %p188 = pneg %p187
      $region22: #{tpu_custom_call.1} parent=5 // pred_check_branch
        %190 = sbr.rel (%p188) target = $region24
      $region23: #{tpu_custom_call.1} parent=5 // pred_region
        // Predicated region
        $region25: #{tpu_custom_call.1} parent=23 // pred_check
          %p191 = pneg %p52
        $region26: #{tpu_custom_call.1} parent=23 // pred_check_branch
          %193 = sbr.rel (%p191) target = $region28
        $region27: #{tpu_custom_call.1} parent=23 // pred_region
          %p194 = scmp.lt.s32.totalorder %s25, 1
          %s195 = scalar_select %p194, %s25, 1
          %p196 = scmp.lt.s32.totalorder %s26, 0
          %s197 = scalar_select %p196, %s26, 0
          %s198 = smul.addr %s195, 12
          %s199 = sadd.s32 %s197, %s198
          %s200 = smul.addr %s199, 8
          %s201 = scalar_lea.vmem %s0, %s200
        $region28: #{tpu_custom_call.1} parent=23 // pred_fallthru
          _
      $region24: #{tpu_custom_call.1} parent=5 // pred_fallthru
        _
      %p202 = scmp.le.s32.totalorder 1, %s18
      %p203 = scmp.lt.s32.totalorder %s18, 3
      %p204 = pnand %p202, %p203
      %p205 = pneg %p204
      // Predicated region
      $region29: #{tpu_custom_call.1} parent=5 // pred_check
        _
      $region30: #{tpu_custom_call.1} parent=5 // pred_check_branch
        %207 = sbr.rel (%p204) target = $region32
      $region31: #{tpu_custom_call.1} parent=5 // pred_region
        %s208 = ssub.s32 %s18, 1
        // Predicated region
        $region33: #{tpu_custom_call.1} parent=31 // pred_check
          %p209 = pneg %p100
        $region34: #{tpu_custom_call.1} parent=31 // pred_check_branch
          %211 = sbr.rel (%p209) target = $region36
        $region35: #{tpu_custom_call.1} parent=31 // pred_region
          %212 = dma.done [#allocation3], 1536
        $region36: #{tpu_custom_call.1} parent=31 // pred_fallthru
          _
        %p213 = scmp.lt.s32.totalorder %s27, 1
        %s214 = scalar_select %p213, %s27, 1
        %p215 = scmp.lt.s32.totalorder %s28, 0
        %s216 = scalar_select %p215, %s28, 0
        %s217 = smul.addr %s214, 12
        %s218 = sadd.s32 %s216, %s217
        %s219 = smul.addr %s218, 8
        %s220 = scalar_lea.vmem %s0, %s219
        %p221 = pneg %p58
        %p222 = pneg %p55
        %p223 = pneg %p79
        %p224 = pneg %p76
        %p225 = pneg %p100
        %p226 = pneg %p97
        %p227 = pneg %p128
        %p228 = pneg %p125
        %s229 = sand.u32 %s115, 1
        %s230 = scalar_lea.sflag [#allocation4], %s229
        %s231 = sand.u32 %s115, 1
        %s232 = smul.addr %s231, 96
        %s233 = scalar_lea.vmem [#allocation5], %s232
        %p234 = pneg %p156
        %p235 = pneg %p153
        %s236 = sand.u32 %s143, 1
        %s237 = scalar_lea.sflag [#allocation7], %s236
        %s238 = sand.u32 %s143, 1
        %s239 = smul.addr %s238, 96
        %s240 = scalar_lea.vmem [#allocation6], %s239
        %p241 = scmp.lt.s32.totalorder %s27, 1
        %s242 = scalar_select %p241, %s27, 1
        %p243 = scmp.lt.s32.totalorder %s28, 0
        %s244 = scalar_select %p243, %s28, 0
        %s245 = smul.addr %s242, 12
        %s246 = sadd.s32 %s244, %s245
        %s247 = smul.addr %s246, 8
        %s248 = scalar_lea.vmem %s0, %s247
        %v249 = vld [vmem:[%s248] sm:$0xff]
        %v250 = vld [vmem:[%s248 + $0x8] sm:$0xff]
        %v251 = vld [vmem:[%s248 + $0x10] sm:$0xff]
        %v252 = vld [vmem:[%s248 + $0x18] sm:$0xff]
        %v253 = vld [vmem:[%s248 + $0x20] sm:$0xff]
        %v254 = vld [vmem:[%s248 + $0x28] sm:$0xff]
        %v255 = vld [vmem:[%s248 + $0x30] sm:$0xff]
        %v256 = vld [vmem:[%s248 + $0x38] sm:$0xff]
        %v257 = vld [vmem:[%s248 + $0x40] sm:$0xff]
        %v258 = vld [vmem:[%s248 + $0x48] sm:$0xff]
        %v259 = vld [vmem:[%s248 + $0x50] sm:$0xff]
        %v260 = vld [vmem:[%s248 + $0x58] sm:$0xff]
        %v261 = vld [vmem:[%s1] sm:$0xff]
        %v262 = vld [vmem:[%s1 + $0x8] sm:$0xff]
        %v263 = vld [vmem:[%s1 + $0x10] sm:$0xff]
        %v264 = vld [vmem:[%s1 + $0x18] sm:$0xff]
        %v265 = vld [vmem:[%s1 + $0x20] sm:$0xff]
        %v266 = vld [vmem:[%s1 + $0x28] sm:$0xff]
        %v267 = vld [vmem:[%s1 + $0x30] sm:$0xff]
        %v268 = vld [vmem:[%s1 + $0x38] sm:$0xff]
        %v269 = vld [vmem:[%s1 + $0x40] sm:$0xff]
        %v270 = vld [vmem:[%s1 + $0x48] sm:$0xff]
        %v271 = vld [vmem:[%s1 + $0x50] sm:$0xff]
        %v272 = vld [vmem:[%s1 + $0x58] sm:$0xff]
        %v273 = vld [vmem:[%s1 + $0x60] sm:$0xff]
        %v274 = vld [vmem:[%s1 + $0x68] sm:$0xff]
        %vm275 = vcmask 785408
        %v277 = vsel %vm275, %v261, 0
        %v280 = vsel %vm275, %v262, 0
        %v283 = vsel %vm275, %v263, 0
        %v286 = vsel %vm275, %v264, 0
        %v289 = vsel %vm275, %v265, 0
        %v292 = vsel %vm275, %v266, 0
        %v295 = vsel %vm275, %v267, 0
        %v298 = vsel %vm275, %v268, 0
        %v301 = vsel %vm275, %v269, 0
        %v304 = vsel %vm275, %v270, 0
        %v307 = vsel %vm275, %v271, 0
        %v310 = vsel %vm275, %v272, 0
        %v313 = vsel %vm275, %v273, 0
        %v316 = vsel %vm275, %v274, 0
        %318 = vmatprep.subr.mxu0 0.0
        %319 = vmatpush1.msra.mxu0 0.0
        %320 = vmatprep.subr.mxu0 0.0
        %321 = vmatpush1.msra.mxu0 0.0
        %322 = vmatprep.subr.mxu0 0.0
        %323 = vmatpush1.msra.mxu0 0.0
        %324 = vmatprep.subr.mxu0 0.0
        %325 = vmatpush1.msra.mxu0 0.0
        %326 = vmatprep.subr.mxu0 0.0
        %327 = vmatpush1.msra.mxu0 %v260
        %328 = vmatprep.subr.mxu0 0.0
        %329 = vmatpush1.msra.mxu0 %v259
        %330 = vmatprep.subr.mxu0 0.0
        %331 = vmatpush1.msra.mxu0 %v258
        %332 = vmatprep.subr.mxu0 0.0
        %333 = vmatpush1.msra.mxu0 %v257
        %334 = vmatprep.subr.mxu0 0.0
        %335 = vmatpush1.msra.mxu0 %v256
        %336 = vmatprep.subr.mxu0 0.0
        %337 = vmatpush1.msra.mxu0 %v255
        %338 = vmatprep.subr.mxu0 0.0
        %339 = vmatpush1.msra.mxu0 %v254
        %340 = vmatprep.subr.mxu0 0.0
        %341 = vmatpush1.msra.mxu0 %v253
        %342 = vmatprep.subr.mxu0 0.0
        %343 = vmatpush1.msra.mxu0 %v252
        %344 = vmatprep.subr.mxu0 0.0
        %345 = vmatpush1.msra.mxu0 %v251
        %346 = vmatprep.subr.mxu0 0.0
        %347 = vmatpush1.msra.mxu0 %v250
        %348 = vmatprep.subr.mxu0 0.0
        %349 = vmatpush1.msra.mxu0 %v249
        %350 = vmatprep.subr.mxu0 0.0
        %351 = vmatpush2.msra.mxu0 0.0
        %352 = vmatprep.subr.mxu0 0.0
        %353 = vmatpush2.msra.mxu0 0.0
        %354 = vmatprep.subr.mxu0 0.0
        %355 = vmatpush2.msra.mxu0 0.0
        %356 = vmatprep.subr.mxu0 0.0
        %357 = vmatpush2.msra.mxu0 0.0
        %358 = vmatprep.subr.mxu0 0.0
        %359 = vmatpush2.msra.mxu0 0.0
        %360 = vmatprep.subr.mxu0 0.0
        %361 = vmatpush2.msra.mxu0 0.0
        %362 = vmatprep.subr.mxu0 0.0
        %363 = vmatpush2.msra.mxu0 0.0
        %364 = vmatprep.subr.mxu0 0.0
        %365 = vmatpush2.msra.mxu0 0.0
        %366 = vmatprep.subr.mxu0 0.0
        %367 = vmatpush2.msra.mxu0 0.0
        %368 = vmatprep.subr.mxu0 0.0
        %369 = vmatpush2.msra.mxu0 0.0
        %370 = vmatprep.subr.mxu0 0.0
        %371 = vmatpush2.msra.mxu0 0.0
        %372 = vmatprep.subr.mxu0 0.0
        %373 = vmatpush2.msra.mxu0 0.0
        %374 = vmatprep.subr.mxu0 0.0
        %375 = vmatpush2.msra.mxu0 0.0
        %376 = vmatprep.subr.mxu0 0.0
        %377 = vmatpush2.msra.mxu0 0.0
        %378 = vmatprep.subr.mxu0 0.0
        %379 = vmatpush2.msra.mxu0 0.0
        %380 = vmatprep.subr.mxu0 0.0
        %381 = vmatpush2.msra.mxu0 0.0
        %382 = vmatprep.mubr.f32.mxu0 0.0
        %383 = vmatmul.mubr.f32.gmra.mxu0 %v277
        %v384 = vpop.f32.mrf.mxu0
        %v385 = vadd.f32 0.0, %v384
        %v386 = vpop.f32.mrf.mxu0
        %387 = vmatprep.mubr.f32.mxu0 0.0
        %388 = vmatmul.mubr.f32.gmra.mxu0 %v280
        %v389 = vpop.f32.mrf.mxu0
        %v390 = vadd.f32 0.0, %v389
        %v391 = vpop.f32.mrf.mxu0
        %392 = vmatprep.mubr.f32.mxu0 0.0
        %393 = vmatmul.mubr.f32.gmra.mxu0 %v283
        %v394 = vpop.f32.mrf.mxu0
        %v395 = vadd.f32 0.0, %v394
        %v396 = vpop.f32.mrf.mxu0
        %397 = vmatprep.mubr.f32.mxu0 0.0
        %398 = vmatmul.mubr.f32.gmra.mxu0 %v286
        %v399 = vpop.f32.mrf.mxu0
        %v400 = vadd.f32 0.0, %v399
        %v401 = vpop.f32.mrf.mxu0
        %402 = vmatprep.mubr.f32.mxu0 0.0
        %403 = vmatmul.mubr.f32.gmra.mxu0 %v289
        %v404 = vpop.f32.mrf.mxu0
        %v405 = vadd.f32 0.0, %v404
        %v406 = vpop.f32.mrf.mxu0
        %407 = vmatprep.mubr.f32.mxu0 0.0
        %408 = vmatmul.mubr.f32.gmra.mxu0 %v292
        %v409 = vpop.f32.mrf.mxu0
        %v410 = vadd.f32 0.0, %v409
        %v411 = vpop.f32.mrf.mxu0
        %412 = vmatprep.mubr.f32.mxu0 0.0
        %413 = vmatmul.mubr.f32.gmra.mxu0 %v295
        %v414 = vpop.f32.mrf.mxu0
        %v415 = vadd.f32 0.0, %v414
        %v416 = vpop.f32.mrf.mxu0
        %417 = vmatprep.mubr.f32.mxu0 0.0
        %418 = vmatmul.mubr.f32.gmra.mxu0 %v298
        %v419 = vpop.f32.mrf.mxu0
        %v420 = vadd.f32 0.0, %v419
        %v421 = vpop.f32.mrf.mxu0
        %422 = vmatprep.mubr.f32.mxu0 0.0
        %423 = vmatmul.mubr.f32.gmra.mxu0 %v301
        %v424 = vpop.f32.mrf.mxu0
        %v425 = vadd.f32 0.0, %v424
        %v426 = vpop.f32.mrf.mxu0
        %427 = vmatprep.mubr.f32.mxu0 0.0
        %428 = vmatmul.mubr.f32.gmra.mxu0 %v304
        %v429 = vpop.f32.mrf.mxu0
        %v430 = vadd.f32 0.0, %v429
        %v431 = vpop.f32.mrf.mxu0
        %432 = vmatprep.mubr.f32.mxu0 0.0
        %433 = vmatmul.mubr.f32.gmra.mxu0 %v307
        %v434 = vpop.f32.mrf.mxu0
        %v435 = vadd.f32 0.0, %v434
        %v436 = vpop.f32.mrf.mxu0
        %437 = vmatprep.mubr.f32.mxu0 0.0
        %438 = vmatmul.mubr.f32.gmra.mxu0 %v310
        %v439 = vpop.f32.mrf.mxu0
        %v440 = vadd.f32 0.0, %v439
        %v441 = vpop.f32.mrf.mxu0
        %442 = vmatprep.mubr.f32.mxu0 0.0
        %443 = vmatmul.mubr.f32.gmra.mxu0 %v313
        %v444 = vpop.f32.mrf.mxu0
        %v445 = vadd.f32 0.0, %v444
        %v446 = vpop.f32.mrf.mxu0
        %447 = vmatprep.mubr.f32.mxu0 0.0
        %448 = vmatmul.mubr.f32.gmra.mxu0 %v316
        %v449 = vpop.f32.mrf.mxu0
        %v450 = vadd.f32 0.0, %v449
        %v451 = vpop.f32.mrf.mxu0
        %452 = vdwg.mxu0
        %v453 = vmul.f32 %v385, %v385
        %v454 = vmul.f32 %v390, %v390
        %v455 = vmul.f32 %v395, %v395
        %v456 = vmul.f32 %v400, %v400
        %v457 = vmul.f32 %v405, %v405
        %v458 = vmul.f32 %v410, %v410
        %v459 = vmul.f32 %v415, %v415
        %v460 = vmul.f32 %v420, %v420
        %v461 = vmul.f32 %v425, %v425
        %v462 = vmul.f32 %v430, %v430
        %v463 = vmul.f32 %v435, %v435
        %v464 = vmul.f32 %v440, %v440
        %v465 = vmul.f32 %v445, %v445
        %v466 = vmul.f32 %v450, %v450
        %v467 = vadd.f32 %v453, %v460
        %v468 = vadd.f32 %v454, %v461
        %v469 = vadd.f32 %v455, %v462
        %v470 = vadd.f32 %v456, %v463
        %v471 = vadd.f32 %v457, %v464
        %v472 = vadd.f32 %v458, %v465
        %v473 = vadd.f32 %v459, %v466
        %v474 = vmax.f32 %v467, %v471
        %v475 = vmax.f32 %v468, %v472
        %v476 = vmax.f32 %v469, %v473
        %v477 = vmax.f32 %v474, %v475
        %v478 = vmax.f32 %v476, %v470
        %v479 = vmax.f32 %v477, %v478
        %v480 = vrot.slane %v479, 4
        %v481 = vmax.f32 %v479, %v480
        %v482 = vrot.slane %v481, 2
        %v483 = vmax.f32 %v481, %v482
        %v484 = vrot.slane %v483, 1
        %v485 = vmax.f32 %v483, %v484
        %vm486 = vcmp.ge.f32.partialorder %v467, %v485
        %vm487 = vcmp.ge.f32.partialorder %v468, %v485
        %vm488 = vcmp.ge.f32.partialorder %v469, %v485
        %vm489 = vcmp.ge.f32.partialorder %v470, %v485
        %vm490 = vcmp.ge.f32.partialorder %v471, %v485
        %vm491 = vcmp.ge.f32.partialorder %v472, %v485
        %vm492 = vcmp.ge.f32.partialorder %v473, %v485
        %v493 = vsel %vm486, -1.0, %v467
        %v494 = vsel %vm487, -1.0, %v468
        %v495 = vsel %vm488, -1.0, %v469
        %v496 = vsel %vm489, -1.0, %v470
        %v497 = vsel %vm490, -1.0, %v471
        %v498 = vsel %vm491, -1.0, %v472
        %v499 = vsel %vm492, -1.0, %v473
        %v500 = vmax.f32 %v493, %v497
        %v501 = vmax.f32 %v494, %v498
        %v502 = vmax.f32 %v495, %v499
        %v503 = vmax.f32 %v500, %v501
        %v504 = vmax.f32 %v502, %v496
        %v505 = vmax.f32 %v503, %v504
        %v506 = vrot.slane %v505, 4
        %v507 = vmax.f32 %v505, %v506
        %v508 = vrot.slane %v507, 2
        %v509 = vmax.f32 %v507, %v508
        %v510 = vrot.slane %v509, 1
        %v511 = vmax.f32 %v509, %v510
        %vm512 = vcmp.ge.f32.partialorder %v493, %v511
        %vm513 = vcmp.ge.f32.partialorder %v494, %v511
        %vm514 = vcmp.ge.f32.partialorder %v495, %v511
        %vm515 = vcmp.ge.f32.partialorder %v496, %v511
        %vm516 = vcmp.ge.f32.partialorder %v497, %v511
        %vm517 = vcmp.ge.f32.partialorder %v498, %v511
        %vm518 = vcmp.ge.f32.partialorder %v499, %v511
        %v519 = vsel %vm512, -1.0, %v493
        %v520 = vsel %vm513, -1.0, %v494
        %v521 = vsel %vm514, -1.0, %v495
        %v522 = vsel %vm515, -1.0, %v496
        %v523 = vsel %vm516, -1.0, %v497
        %v524 = vsel %vm517, -1.0, %v498
        %v525 = vsel %vm518, -1.0, %v499
        %v526 = vmax.f32 %v519, %v523
        %v527 = vmax.f32 %v520, %v524
        %v528 = vmax.f32 %v521, %v525
        %v529 = vmax.f32 %v526, %v527
        %v530 = vmax.f32 %v528, %v522
        %v531 = vmax.f32 %v529, %v530
        %v532 = vrot.slane %v531, 4
        %v533 = vmax.f32 %v531, %v532
        %v534 = vrot.slane %v533, 2
        %v535 = vmax.f32 %v533, %v534
        %v536 = vrot.slane %v535, 1
        %v537 = vmax.f32 %v535, %v536
        %vm538 = vcmp.ge.f32.partialorder %v519, %v537
        %vm539 = vcmp.ge.f32.partialorder %v520, %v537
        %vm540 = vcmp.ge.f32.partialorder %v521, %v537
        %vm541 = vcmp.ge.f32.partialorder %v522, %v537
        %vm542 = vcmp.ge.f32.partialorder %v523, %v537
        %vm543 = vcmp.ge.f32.partialorder %v524, %v537
        %vm544 = vcmp.ge.f32.partialorder %v525, %v537
        %v545 = vsel %vm538, -1.0, %v519
        %v546 = vsel %vm539, -1.0, %v520
        %v547 = vsel %vm540, -1.0, %v521
        %v548 = vsel %vm541, -1.0, %v522
        %v549 = vsel %vm542, -1.0, %v523
        %v550 = vsel %vm543, -1.0, %v524
        %v551 = vsel %vm544, -1.0, %v525
        %v552 = vmax.f32 %v545, %v549
        %v553 = vmax.f32 %v546, %v550
        %v554 = vmax.f32 %v547, %v551
        %v555 = vmax.f32 %v552, %v553
        %v556 = vmax.f32 %v554, %v548
        %v557 = vmax.f32 %v555, %v556
        %v558 = vrot.slane %v557, 4
        %v559 = vmax.f32 %v557, %v558
        %v560 = vrot.slane %v559, 2
        %v561 = vmax.f32 %v559, %v560
        %v562 = vrot.slane %v561, 1
        %v563 = vmax.f32 %v561, %v562
        %vm564 = vcmp.ge.f32.partialorder %v545, %v563
        %vm565 = vcmp.ge.f32.partialorder %v546, %v563
        %vm566 = vcmp.ge.f32.partialorder %v547, %v563
        %vm567 = vcmp.ge.f32.partialorder %v548, %v563
        %vm568 = vcmp.ge.f32.partialorder %v549, %v563
        %vm569 = vcmp.ge.f32.partialorder %v550, %v563
        %vm570 = vcmp.ge.f32.partialorder %v551, %v563
        %v571 = vsel %vm564, -1.0, %v545
        %v572 = vsel %vm565, -1.0, %v546
        %v573 = vsel %vm566, -1.0, %v547
        %v574 = vsel %vm567, -1.0, %v548
        %v575 = vsel %vm568, -1.0, %v549
        %v576 = vsel %vm569, -1.0, %v550
        %v577 = vsel %vm570, -1.0, %v551
        %v578 = vmax.f32 %v571, %v575
        %v579 = vmax.f32 %v572, %v576
        %v580 = vmax.f32 %v573, %v577
        %v581 = vmax.f32 %v578, %v579
        %v582 = vmax.f32 %v580, %v574
        %v583 = vmax.f32 %v581, %v582
        %v584 = vrot.slane %v583, 4
        %v585 = vmax.f32 %v583, %v584
        %v586 = vrot.slane %v585, 2
        %v587 = vmax.f32 %v585, %v586
        %v588 = vrot.slane %v587, 1
        %v589 = vmax.f32 %v587, %v588
        %vm590 = vcmp.ge.f32.partialorder %v467, %v589
        %vm591 = vcmp.ge.f32.partialorder %v468, %v589
        %vm592 = vcmp.ge.f32.partialorder %v469, %v589
        %vm593 = vcmp.ge.f32.partialorder %v470, %v589
        %vm594 = vcmp.ge.f32.partialorder %v471, %v589
        %vm595 = vcmp.ge.f32.partialorder %v472, %v589
        %vm596 = vcmp.ge.f32.partialorder %v473, %v589
        %v597 = vsel %vm590, %v385, 0.0
        %v598 = vsel %vm591, %v390, 0.0
        %v599 = vsel %vm592, %v395, 0.0
        %v600 = vsel %vm593, %v400, 0.0
        %v601 = vsel %vm594, %v405, 0.0
        %v602 = vsel %vm595, %v410, 0.0
        %v603 = vsel %vm596, %v415, 0.0
        %v604 = vsel %vm590, %v420, 0.0
        %v605 = vsel %vm591, %v425, 0.0
        %v606 = vsel %vm592, %v430, 0.0
        %v607 = vsel %vm593, %v435, 0.0
        %v608 = vsel %vm594, %v440, 0.0
        %v609 = vsel %vm595, %v445, 0.0
        %v610 = vsel %vm596, %v450, 0.0
        %v611 = vld [vmem:[#allocation2] sm:$0xff]
        %v612 = vld [vmem:[#allocation2 + $0x8] sm:$0xff]
        %v613 = vld [vmem:[#allocation2 + $0x10] sm:$0xff]
        %v614 = vld [vmem:[#allocation2 + $0x18] sm:$0xff]
        %v615 = vld [vmem:[#allocation2 + $0x20] sm:$0xff]
        %v616 = vld [vmem:[#allocation2 + $0x28] sm:$0xff]
        %v617 = vld [vmem:[#allocation2 + $0x30] sm:$0xff]
        %v618 = vld [vmem:[#allocation2 + $0x38] sm:$0xff]
        %v619 = vld [vmem:[#allocation2 + $0x40] sm:$0xff]
        %v620 = vld [vmem:[#allocation2 + $0x48] sm:$0xff]
        %v621 = vld [vmem:[#allocation2 + $0x50] sm:$0xff]
        %v622 = vld [vmem:[#allocation2 + $0x58] sm:$0xff]
        %vm623 = vcmask 916480
        %v625 = vsel %vm623, %v611, 0
        %v628 = vsel %vm623, %v612, 0
        %v631 = vsel %vm623, %v613, 0
        %v634 = vsel %vm623, %v614, 0
        %v637 = vsel %vm623, %v615, 0
        %v640 = vsel %vm623, %v616, 0
        %v643 = vsel %vm623, %v617, 0
        %v646 = vsel %vm623, %v618, 0
        %v649 = vsel %vm623, %v619, 0
        %v652 = vsel %vm623, %v620, 0
        %v655 = vsel %vm623, %v621, 0
        %v658 = vsel %vm623, %v622, 0
        %660 = vmatprep.subr.mxu0 0.0
        %661 = vmatpush1.msra.mxu0 0.0
        %662 = vmatprep.subr.mxu0 0.0
        %663 = vmatpush1.msra.mxu0 0.0
        %664 = vmatprep.subr.mxu0 0.0
        %665 = vmatpush1.msra.mxu0 %v610
        %666 = vmatprep.subr.mxu0 0.0
        %667 = vmatpush1.msra.mxu0 %v609
        %668 = vmatprep.subr.mxu0 0.0
        %669 = vmatpush1.msra.mxu0 %v608
        %670 = vmatprep.subr.mxu0 0.0
        %671 = vmatpush1.msra.mxu0 %v607
        %672 = vmatprep.subr.mxu0 0.0
        %673 = vmatpush1.msra.mxu0 %v606
        %674 = vmatprep.subr.mxu0 0.0
        %675 = vmatpush1.msra.mxu0 %v605
        %676 = vmatprep.subr.mxu0 0.0
        %677 = vmatpush1.msra.mxu0 %v604
        %678 = vmatprep.subr.mxu0 0.0
        %679 = vmatpush1.msra.mxu0 %v603
        %680 = vmatprep.subr.mxu0 0.0
        %681 = vmatpush1.msra.mxu0 %v602
        %682 = vmatprep.subr.mxu0 0.0
        %683 = vmatpush1.msra.mxu0 %v601
        %684 = vmatprep.subr.mxu0 0.0
        %685 = vmatpush1.msra.mxu0 %v600
        %686 = vmatprep.subr.mxu0 0.0
        %687 = vmatpush1.msra.mxu0 %v599
        %688 = vmatprep.subr.mxu0 0.0
        %689 = vmatpush1.msra.mxu0 %v598
        %690 = vmatprep.subr.mxu0 0.0
        %691 = vmatpush1.msra.mxu0 %v597
        %692 = vmatprep.subr.mxu0 0.0
        %693 = vmatpush2.msra.mxu0 0.0
        %694 = vmatprep.subr.mxu0 0.0
        %695 = vmatpush2.msra.mxu0 0.0
        %696 = vmatprep.subr.mxu0 0.0
        %697 = vmatpush2.msra.mxu0 0.0
        %698 = vmatprep.subr.mxu0 0.0
        %699 = vmatpush2.msra.mxu0 0.0
        %700 = vmatprep.subr.mxu0 0.0
        %701 = vmatpush2.msra.mxu0 0.0
        %702 = vmatprep.subr.mxu0 0.0
        %703 = vmatpush2.msra.mxu0 0.0
        %704 = vmatprep.subr.mxu0 0.0
        %705 = vmatpush2.msra.mxu0 0.0
        %706 = vmatprep.subr.mxu0 0.0
        %707 = vmatpush2.msra.mxu0 0.0
        %708 = vmatprep.subr.mxu0 0.0
        %709 = vmatpush2.msra.mxu0 0.0
        %710 = vmatprep.subr.mxu0 0.0
        %711 = vmatpush2.msra.mxu0 0.0
        %712 = vmatprep.subr.mxu0 0.0
        %713 = vmatpush2.msra.mxu0 0.0
        %714 = vmatprep.subr.mxu0 0.0
        %715 = vmatpush2.msra.mxu0 0.0
        %716 = vmatprep.subr.mxu0 0.0
        %717 = vmatpush2.msra.mxu0 0.0
        %718 = vmatprep.subr.mxu0 0.0
        %719 = vmatpush2.msra.mxu0 0.0
        %720 = vmatprep.subr.mxu0 0.0
        %721 = vmatpush2.msra.mxu0 0.0
        %722 = vmatprep.subr.mxu0 0.0
        %723 = vmatpush2.msra.mxu0 0.0
        %724 = vmatprep.mubr.f32.mxu0 0.0
        %725 = vmatmul.mubr.f32.gmra.mxu0 %v625
        %v726 = vpop.f32.mrf.mxu0
        %v727 = vadd.f32 0.0, %v726
        %v728 = vpop.f32.mrf.mxu0
        %729 = vmatprep.mubr.f32.mxu0 0.0
        %730 = vmatmul.mubr.f32.gmra.mxu0 %v628
        %v731 = vpop.f32.mrf.mxu0
        %v732 = vadd.f32 0.0, %v731
        %v733 = vpop.f32.mrf.mxu0
        %734 = vmatprep.mubr.f32.mxu0 0.0
        %735 = vmatmul.mubr.f32.gmra.mxu0 %v631
        %v736 = vpop.f32.mrf.mxu0
        %v737 = vadd.f32 0.0, %v736
        %v738 = vpop.f32.mrf.mxu0
        %739 = vmatprep.mubr.f32.mxu0 0.0
        %740 = vmatmul.mubr.f32.gmra.mxu0 %v634
        %v741 = vpop.f32.mrf.mxu0
        %v742 = vadd.f32 0.0, %v741
        %v743 = vpop.f32.mrf.mxu0
        %744 = vmatprep.mubr.f32.mxu0 0.0
        %745 = vmatmul.mubr.f32.gmra.mxu0 %v637
        %v746 = vpop.f32.mrf.mxu0
        %v747 = vadd.f32 0.0, %v746
        %v748 = vpop.f32.mrf.mxu0
        %749 = vmatprep.mubr.f32.mxu0 0.0
        %750 = vmatmul.mubr.f32.gmra.mxu0 %v640
        %v751 = vpop.f32.mrf.mxu0
        %v752 = vadd.f32 0.0, %v751
        %v753 = vpop.f32.mrf.mxu0
        %754 = vmatprep.mubr.f32.mxu0 0.0
        %755 = vmatmul.mubr.f32.gmra.mxu0 %v643
        %v756 = vpop.f32.mrf.mxu0
        %v757 = vadd.f32 0.0, %v756
        %v758 = vpop.f32.mrf.mxu0
        %759 = vmatprep.mubr.f32.mxu0 0.0
        %760 = vmatmul.mubr.f32.gmra.mxu0 %v646
        %v761 = vpop.f32.mrf.mxu0
        %v762 = vadd.f32 0.0, %v761
        %v763 = vpop.f32.mrf.mxu0
        %764 = vmatprep.mubr.f32.mxu0 0.0
        %765 = vmatmul.mubr.f32.gmra.mxu0 %v649
        %v766 = vpop.f32.mrf.mxu0
        %v767 = vadd.f32 0.0, %v766
        %v768 = vpop.f32.mrf.mxu0
        %769 = vmatprep.mubr.f32.mxu0 0.0
        %770 = vmatmul.mubr.f32.gmra.mxu0 %v652
        %v771 = vpop.f32.mrf.mxu0
        %v772 = vadd.f32 0.0, %v771
        %v773 = vpop.f32.mrf.mxu0
        %774 = vmatprep.mubr.f32.mxu0 0.0
        %775 = vmatmul.mubr.f32.gmra.mxu0 %v655
        %v776 = vpop.f32.mrf.mxu0
        %v777 = vadd.f32 0.0, %v776
        %v778 = vpop.f32.mrf.mxu0
        %779 = vmatprep.mubr.f32.mxu0 0.0
        %780 = vmatmul.mubr.f32.gmra.mxu0 %v658
        %v781 = vpop.f32.mrf.mxu0
        %v782 = vadd.f32 0.0, %v781
        %v783 = vpop.f32.mrf.mxu0
        %784 = vdwg.mxu0
        %785 = vst [vmem:[%s233] sm:$0xff] %v727
        %786 = vst [vmem:[%s233 + $0x8] sm:$0xff] %v732
        %787 = vst [vmem:[%s233 + $0x10] sm:$0xff] %v737
        %788 = vst [vmem:[%s233 + $0x18] sm:$0xff] %v742
        %789 = vst [vmem:[%s233 + $0x20] sm:$0xff] %v747
        %790 = vst [vmem:[%s233 + $0x28] sm:$0xff] %v752
        %791 = vst [vmem:[%s233 + $0x30] sm:$0xff] %v757
        %792 = vst [vmem:[%s233 + $0x38] sm:$0xff] %v762
        %793 = vst [vmem:[%s233 + $0x40] sm:$0xff] %v767
        %794 = vst [vmem:[%s233 + $0x48] sm:$0xff] %v772
        %795 = vst [vmem:[%s233 + $0x50] sm:$0xff] %v777
        %796 = vst [vmem:[%s233 + $0x58] sm:$0xff] %v782
        %v797 = vsub.f32 %v249, %v727
        %v798 = vsub.f32 %v250, %v732
        %v799 = vsub.f32 %v251, %v737
        %v800 = vsub.f32 %v252, %v742
        %v801 = vsub.f32 %v253, %v747
        %v802 = vsub.f32 %v254, %v752
        %v803 = vsub.f32 %v255, %v757
        %v804 = vsub.f32 %v256, %v762
        %v805 = vsub.f32 %v257, %v767
        %v806 = vsub.f32 %v258, %v772
        %v807 = vsub.f32 %v259, %v777
        %v808 = vsub.f32 %v260, %v782
        %809 = vst [vmem:[%s240] sm:$0xff] %v797
        %810 = vst [vmem:[%s240 + $0x8] sm:$0xff] %v798
        %811 = vst [vmem:[%s240 + $0x10] sm:$0xff] %v799
        %812 = vst [vmem:[%s240 + $0x18] sm:$0xff] %v800
        %813 = vst [vmem:[%s240 + $0x20] sm:$0xff] %v801
        %814 = vst [vmem:[%s240 + $0x28] sm:$0xff] %v802
        %815 = vst [vmem:[%s240 + $0x30] sm:$0xff] %v803
        %816 = vst [vmem:[%s240 + $0x38] sm:$0xff] %v804
        %817 = vst [vmem:[%s240 + $0x40] sm:$0xff] %v805
        %818 = vst [vmem:[%s240 + $0x48] sm:$0xff] %v806
        %819 = vst [vmem:[%s240 + $0x50] sm:$0xff] %v807
        %820 = vst [vmem:[%s240 + $0x58] sm:$0xff] %v808
        %s821 = sand.u32 %s115, 1
        %s822 = scalar_lea.sflag [#allocation4], %s821
        %s823 = sand.u32 %s115, 1
        %s824 = smul.addr %s823, 96
        %s825 = scalar_lea.vmem [#allocation5], %s824
        %s826 = sand.u32 %s143, 1
        %s827 = scalar_lea.sflag [#allocation7], %s826
        %s828 = sand.u32 %s143, 1
        %s829 = smul.addr %s828, 96
        %s830 = scalar_lea.vmem [#allocation6], %s829
        // Predicated region
        $region37: #{tpu_custom_call.1} parent=31 // pred_check
          %p831 = pneg %p125
        $region38: #{tpu_custom_call.1} parent=31 // pred_check_branch
          %833 = sbr.rel (%p831) target = $region40
        $region39: #{tpu_custom_call.1} parent=31 // pred_region
          %s835 = ssub.s32 1536, 1536
          %836 = vsyncadd %s822, %s835
          %s837 = smul.addr %s27, 12
          %s838 = sadd.s32 %s28, %s837
          %s839 = smul.addr %s838, 128
          %s840 = scalar_lea.hbm %s3, %s839
          %s841 = sshll.u32 %s825, 4
          %s842 = int_to_ptr.vmem [resolvable:$true] %s841
          %847 = dma.vmem_to_hbm [thread:$0]  %s842, 1536, %s840, %s822, 128, 128, 8
        $region40: #{tpu_custom_call.1} parent=31 // pred_fallthru
          _
        // Predicated region
        $region41: #{tpu_custom_call.1} parent=31 // pred_check
          %p848 = pneg %p153
        $region42: #{tpu_custom_call.1} parent=31 // pred_check_branch
          %850 = sbr.rel (%p848) target = $region44
        $region43: #{tpu_custom_call.1} parent=31 // pred_region
          %s852 = ssub.s32 1536, 1536
          %853 = vsyncadd %s827, %s852
          %s854 = smul.addr %s27, 12
          %s855 = sadd.s32 %s28, %s854
          %s856 = smul.addr %s855, 128
          %s857 = scalar_lea.hbm %s4, %s856
          %s858 = sshll.u32 %s830, 4
          %s859 = int_to_ptr.vmem [resolvable:$true] %s858
          %864 = dma.vmem_to_hbm [thread:$0]  %s859, 1536, %s857, %s827, 128, 128, 8
        $region44: #{tpu_custom_call.1} parent=31 // pred_fallthru
          _
      $region32: #{tpu_custom_call.1} parent=5 // pred_fallthru
        _
      %p865 = scmp.le.s32.totalorder 2, %s18
      // Predicated region
      $region45: #{tpu_custom_call.1} parent=5 // pred_check
        %p866 = pneg %p865
      $region46: #{tpu_custom_call.1} parent=5 // pred_check_branch
        %868 = sbr.rel (%p866) target = $region48
      $region47: #{tpu_custom_call.1} parent=5 // pred_region
        %s869 = ssub.s32 %s18, 2
        // Predicated region
        $region49: #{tpu_custom_call.1} parent=47 // pred_check
          %p870 = pneg %p131
        $region50: #{tpu_custom_call.1} parent=47 // pred_check_branch
          %872 = sbr.rel (%p870) target = $region52
        $region51: #{tpu_custom_call.1} parent=47 // pred_region
          %s873 = sand.u32 %s116, 1
          %s874 = scalar_lea.sflag [#allocation4], %s873
          %s875 = sand.u32 %s116, 1
          %s876 = smul.addr %s875, 96
          %s877 = scalar_lea.vmem [#allocation5], %s876
          %878 = dma.done %s874, 1536
        $region52: #{tpu_custom_call.1} parent=47 // pred_fallthru
          _
        // Predicated region
        $region53: #{tpu_custom_call.1} parent=47 // pred_check
          %p879 = pneg %p159
        $region54: #{tpu_custom_call.1} parent=47 // pred_check_branch
          %881 = sbr.rel (%p879) target = $region56
        $region55: #{tpu_custom_call.1} parent=47 // pred_region
          %s882 = sand.u32 %s144, 1
          %s883 = scalar_lea.sflag [#allocation7], %s882
          %s884 = sand.u32 %s144, 1
          %s885 = smul.addr %s884, 96
          %s886 = scalar_lea.vmem [#allocation6], %s885
          %887 = dma.done %s883, 1536
        $region56: #{tpu_custom_call.1} parent=47 // pred_fallthru
          _
      $region48: #{tpu_custom_call.1} parent=5 // pred_fallthru
        _
    $region6: #{tpu_custom_call.1} parent=1 // loop_footer
      %s22 = sadd.s32 1, %s18
    $region7: #{tpu_custom_call.1} parent=1 // loop_footer_branch
      %17 = sbr.rel target = $region3
    $region8: #{tpu_custom_call.1} parent=1 // loop_exit
      _
    %888 = vsyncpa [#allocation3], 1
    %s889 = scalar_lea.sflag [#allocation3], 1
    %890 = vsyncpa %s889, 1
    %891 = vsyncpa [#allocation4], 1
    %s892 = scalar_lea.sflag [#allocation4], 1
    %893 = vsyncpa %s892, 1
    %894 = vsyncpa [#allocation7], 1
    %s895 = scalar_lea.sflag [#allocation7], 1
    %896 = vsyncpa %s895, 1

</llo_original>
